<compile_context>
chip_gen: v6e
topology: v6e:2x2x1
jax: 0.10.0
libtpu: 0.0.40
codegen_flags: <defaults>
</compile_context>

<pallas_src>
import jax
import jax.numpy as jnp
import numpy as np
from jax.experimental import pallas as pl
from jax.experimental.pallas import tpu as pltpu


def _round_up(n, m):
    return ((n + m - 1) // m) * m


def discriminator_kernel(x_ref, w1_ref, b1_ref, w2_ref, b2_ref,
                         g_ref, beta_ref, w3_ref, b3_ref, o_ref):
    # Read broadcast params once (hygiene: avoids re-broadcast if an inner loop
    # is ever added).
    b1 = b1_ref[...]
    b2 = b2_ref[...]
    gamma = g_ref[...]
    beta = beta_ref[...]
    w3 = w3_ref[...]
    b3 = b3_ref[0, 0]

    # --- Linear 1 (+ Dropout(0.0) == identity) + SiLU -----------------------
    # bf16 operands into the MXU, f32 accumulation; elementwise stays f32.
    x = x_ref[...].astype(jnp.bfloat16)
    h = jnp.dot(x, w1_ref[...], preferred_element_type=jnp.float32) + b1
    h = h * jax.nn.sigmoid(h)                                   # SiLU (f32)

    # --- Linear 2 + LayerNorm (+ Dropout(0.0)) + SiLU -----------------------
    h = jnp.dot(h.astype(jnp.bfloat16), w2_ref[...],
                preferred_element_type=jnp.float32) + b2
    mean = jnp.mean(h, axis=-1, keepdims=True)
    var = jnp.mean(jnp.square(h - mean), axis=-1, keepdims=True)
    h = (h - mean) * jax.lax.rsqrt(var + 1e-5)
    h = h * gamma + beta
    h = h * jax.nn.sigmoid(h)                                   # SiLU (f32)

    # --- Final Linear (D -> 1) as VPU multiply + XLU lane reduction ---------
    # (an N=1 MXU matmul would waste nearly the whole MXU output width)
    logits = jnp.sum(h * w3, axis=-1) + b3                      # (TILE_B,)
    o_ref[...] = logits[None, :].astype(o_ref.dtype)            # lane-dense (1, TILE_B)


def discriminator_forward(x, params, *, tile_b=None):
    """x: (B, latent) f32.  Returns (B, 1) f32 logits."""
    w1, b1, w2, b2, g, beta, w3, b3 = params
    B, latent = x.shape
    D = w1.shape[1]

    if tile_b is None:
        # Single tile for small batches; 512-row tiles (multiple of 8 and 128)
        # for large batches so x/out DMA pipelines behind compute.
        tile_b = _round_up(B, 8) if B <= 512 else 512
    b_pad = _round_up(B, tile_b)
    if b_pad > tile_b:
        # lane-dense output blocks must be 128-aligned when there is >1 tile
        assert tile_b % 128 == 0, "tile_b must be a multiple of 128 when tiling"
    if b_pad != B:
        x = jnp.pad(x, ((0, b_pad - B), (0, 0)))
    num_tiles = b_pad // tile_b

    const2 = lambda i: (0, 0)
    grid_spec = pltpu.PrefetchScalarGridSpec(
        num_scalar_prefetch=0,
        grid=(num_tiles,),
        in_specs=[
            pl.BlockSpec((tile_b, latent), lambda i: (i, 0)),        # x rows
            pl.BlockSpec((latent, D), const2),                       # w1 (bf16, resident)
            pl.BlockSpec((1, D), const2),                            # b1
            pl.BlockSpec((D, D), const2),                            # w2 (bf16, resident)
            pl.BlockSpec((1, D), const2),                            # b2
            pl.BlockSpec((1, D), const2),                            # LN gamma
            pl.BlockSpec((1, D), const2),                            # LN beta
            pl.BlockSpec((1, D), const2),                            # w3 row (f32)
            pl.BlockSpec(memory_space=pltpu.MemorySpace.SMEM),       # b3 scalar
        ],
        out_specs=pl.BlockSpec((1, tile_b), lambda i: (0, i)),       # lane-dense logits
    )

    # VMEM budget: resident weights/biases + double-buffered x & out tiles
    # + f32 activation intermediates.  Clamp to [32 MiB, 48 MiB] (safe on
    # v5e/v6e 128 MiB and under v7x's 64 MiB physical).
    resident = (w1.size + w2.size) * 2 \
        + (b1.size + b2.size + g.size + beta.size + w3.size) * 4
    per_tile = 2 * tile_b * latent * 4 + 2 * tile_b * 4 + 6 * tile_b * D * 4
    vmem_limit = int(min(48 * 2**20, max(32 * 2**20, 2 * (resident + per_tile))))

    flops = 2 * b_pad * D * (latent + D + 1)
    transcendentals = 2 * b_pad * D + b_pad                    # 2 sigmoids + rsqrt
    bytes_accessed = int(resident + b_pad * latent * 4 + b_pad * 4)

    out = pl.pallas_call(
        discriminator_kernel,
        out_shape=jax.ShapeDtypeStruct((1, b_pad), jnp.float32),
        grid_spec=grid_spec,
        compiler_params=pltpu.CompilerParams(
            dimension_semantics=("parallel",),   # v7x: shard batch tiles across 2 TCs
            vmem_limit_bytes=vmem_limit),
        cost_estimate=pl.CostEstimate(flops=flops,
                                      transcendentals=transcendentals,
                                      bytes_accessed=bytes_accessed),
    )(x, w1, b1, w2, b2, g, beta, w3, b3)

    return out.reshape(b_pad, 1)[:B]


def init_params(key, latent_dim, disc_dim):
    """Kaiming-normal (fan_in, relu) init, biases = 0, LN gamma=1 / beta=0.

    Matmul weights are stored pre-transposed as (in, out) in bf16 (MXU operands);
    the final (D -> 1) layer is kept as an f32 (1, D) row for the VPU reduction.
    """
    k1, k2, k3 = jax.random.split(key, 3)

    def kaiming_t(k, fan_in, fan_out, dtype):
        std = np.sqrt(2.0 / fan_in)
        w = jax.random.normal(k, (fan_out, fan_in), dtype=jnp.float32) * std  # torch (out,in)
        return jnp.transpose(w).astype(dtype)                                  # (in, out)

    w1 = kaiming_t(k1, latent_dim, disc_dim, jnp.bfloat16)   # (latent, D)
    b1 = jnp.zeros((1, disc_dim), jnp.float32)
    w2 = kaiming_t(k2, disc_dim, disc_dim, jnp.bfloat16)     # (D, D)
    b2 = jnp.zeros((1, disc_dim), jnp.float32)
    g = jnp.ones((1, disc_dim), jnp.float32)                 # LayerNorm weight
    beta = jnp.zeros((1, disc_dim), jnp.float32)             # LayerNorm bias
    w3 = (jax.random.normal(k3, (1, disc_dim), jnp.float32)
          * np.sqrt(2.0 / disc_dim))                         # (1, D) row
    b3 = jnp.zeros((1, 1), jnp.float32)
    return (w1, b1, w2, b2, g, beta, w3, b3)


def reference_forward(x, params):
    """Pure-JAX reference mirroring the kernel's bf16 matmul operands."""
    w1, b1, w2, b2, g, beta, w3, b3 = params
    xq = x.astype(jnp.bfloat16).astype(jnp.float32)
    h = xq @ w1.astype(jnp.float32) + b1
    h = h * jax.nn.sigmoid(h)
    hq = h.astype(jnp.bfloat16).astype(jnp.float32)
    h = hq @ w2.astype(jnp.float32) + b2
    mean = jnp.mean(h, axis=-1, keepdims=True)
    var = jnp.mean((h - mean) ** 2, axis=-1, keepdims=True)
    h = (h - mean) * jax.lax.rsqrt(var + 1e-5) * g + beta
    h = h * jax.nn.sigmoid(h)
    return jnp.sum(h * w3, axis=-1, keepdims=True) + b3


if __name__ == "__main__":
    LATENT_DIM = 32
    DISC_DIM = 128  # small lane-aligned stand-in for discriminator_dim=1024

    key = jax.random.PRNGKey(0)
    kx1, kx2, kp = jax.random.split(key, 3)
    params = init_params(kp, LATENT_DIM, DISC_DIM)

    # Case 1: tiny batch, single tile.
    x1 = jax.random.normal(kx1, (8, LATENT_DIM), dtype=jnp.float32)
    out1 = jax.block_until_ready(discriminator_forward(x1, params))
    ref1 = reference_forward(x1, params)
    np.testing.assert_allclose(np.asarray(out1), np.asarray(ref1), rtol=1e-2, atol=1e-2)
    assert out1.shape == (8, 1)

    # Case 2: multi-tile batch grid with padding (exercises the pipelined path).
    x2 = jax.random.normal(kx2, (300, LATENT_DIM), dtype=jnp.float32)
    out2 = jax.block_until_ready(discriminator_forward(x2, params, tile_b=128))
    ref2 = reference_forward(x2, params)
    np.testing.assert_allclose(np.asarray(out2), np.asarray(ref2), rtol=1e-2, atol=1e-2)
    assert out2.shape == (300, 1)

    # TODO(synk): Dropout(p=0.0) is identity (inference); a training path would
    # need pltpu.prng_seed / prng_random_bits masking.
    print("KERNEL_OK")
</pallas_src>

<mosaic_0001>
module attributes {stable_mosaic.version = 11 : i64} {
  func.func @discriminator_kernel(%arg0: i32, %arg1: memref<8x32xf32, #tpu.memory_space<vmem>>, %arg2: memref<32x128xbf16, #tpu.memory_space<vmem>>, %arg3: memref<1x128xf32, #tpu.memory_space<vmem>>, %arg4: memref<128x128xbf16, #tpu.memory_space<vmem>>, %arg5: memref<1x128xf32, #tpu.memory_space<vmem>>, %arg6: memref<1x128xf32, #tpu.memory_space<vmem>>, %arg7: memref<1x128xf32, #tpu.memory_space<vmem>>, %arg8: memref<1x128xf32, #tpu.memory_space<vmem>>, %arg9: memref<1x1xf32, #tpu.memory_space<smem>>, %arg10: memref<1x8xf32, #tpu.memory_space<vmem>>) attributes {dimension_semantics = [#tpu.dimension_semantics<parallel>], iteration_bounds = array<i64: 1>, scalar_prefetch = 0 : i64, scratch_operands = 0 : i64, tpu.core_type = #tpu.core_type<tc>, window_params = [{transform_indices = @transform_0, window_bounds = array<i64: 8, 32>}, {pipeline_mode = #tpu.pipeline_mode<synchronous>, transform_indices = @transform_1, window_bounds = array<i64: 32, 128>}, {pipeline_mode = #tpu.pipeline_mode<synchronous>, transform_indices = @transform_2, window_bounds = array<i64: 1, 128>}, {pipeline_mode = #tpu.pipeline_mode<synchronous>, transform_indices = @transform_3, window_bounds = array<i64: 128, 128>}, {pipeline_mode = #tpu.pipeline_mode<synchronous>, transform_indices = @transform_4, window_bounds = array<i64: 1, 128>}, {pipeline_mode = #tpu.pipeline_mode<synchronous>, transform_indices = @transform_5, window_bounds = array<i64: 1, 128>}, {pipeline_mode = #tpu.pipeline_mode<synchronous>, transform_indices = @transform_6, window_bounds = array<i64: 1, 128>}, {pipeline_mode = #tpu.pipeline_mode<synchronous>, transform_indices = @transform_7, window_bounds = array<i64: 1, 128>}, {transform_indices = @transform_8, window_bounds = array<i64: 1, 1>}, {transform_indices = @transform_9, window_bounds = array<i64: 1, 8>}]} {
    %c0 = arith.constant 0 : index
    %c0_0 = arith.constant 0 : index
    %0 = vector.load %arg3[%c0, %c0_0] : memref<1x128xf32, #tpu.memory_space<vmem>>, vector<1x128xf32>
    %c0_1 = arith.constant 0 : index
    %c0_2 = arith.constant 0 : index
    %1 = vector.load %arg5[%c0_1, %c0_2] : memref<1x128xf32, #tpu.memory_space<vmem>>, vector<1x128xf32>
    %c0_3 = arith.constant 0 : index
    %c0_4 = arith.constant 0 : index
    %2 = vector.load %arg6[%c0_3, %c0_4] : memref<1x128xf32, #tpu.memory_space<vmem>>, vector<1x128xf32>
    %c0_5 = arith.constant 0 : index
    %c0_6 = arith.constant 0 : index
    %3 = vector.load %arg7[%c0_5, %c0_6] : memref<1x128xf32, #tpu.memory_space<vmem>>, vector<1x128xf32>
    %c0_7 = arith.constant 0 : index
    %c0_8 = arith.constant 0 : index
    %4 = vector.load %arg8[%c0_7, %c0_8] : memref<1x128xf32, #tpu.memory_space<vmem>>, vector<1x128xf32>
    %c0_9 = arith.constant 0 : index
    %c0_10 = arith.constant 0 : index
    %5 = memref.load %arg9[%c0_9, %c0_10] : memref<1x1xf32, #tpu.memory_space<smem>>
    %c0_11 = arith.constant 0 : index
    %c0_12 = arith.constant 0 : index
    %6 = vector.load %arg1[%c0_11, %c0_12] : memref<8x32xf32, #tpu.memory_space<vmem>>, vector<8x32xf32>
    %7 = arith.truncf %6 : vector<8x32xf32> to vector<8x32xbf16>
    %c0_13 = arith.constant 0 : index
    %c0_14 = arith.constant 0 : index
    %8 = vector.load %arg2[%c0_13, %c0_14] : memref<32x128xbf16, #tpu.memory_space<vmem>>, vector<32x128xbf16>
    %cst = arith.constant dense<0.000000e+00> : vector<8x128xf32>
    %9 = tpu.matmul %7, %8, %cst {dimension_numbers = #tpu.dot_dimension_numbers<[1], [0], [0], [1], [0, 0, 1, 1], [], []>} : vector<8x32xbf16>, vector<32x128xbf16>, vector<8x128xf32> -> vector<8x128xf32>
    %10 = vector.broadcast %0 : vector<1x128xf32> to vector<8x128xf32>
    %11 = arith.addf %9, %10 : vector<8x128xf32>
    %12 = arith.negf %11 : vector<8x128xf32>
    %13 = math.exp %12 : vector<8x128xf32>
    %cst_15 = arith.constant 1.000000e+00 : f32
    %14 = vector.broadcast %cst_15 : f32 to vector<8x128xf32>
    %15 = arith.addf %14, %13 : vector<8x128xf32>
    %16 = arith.divf %14, %15 : vector<8x128xf32>
    %17 = arith.mulf %11, %16 : vector<8x128xf32>
    %18 = arith.truncf %17 : vector<8x128xf32> to vector<8x128xbf16>
    %c0_16 = arith.constant 0 : index
    %c0_17 = arith.constant 0 : index
    %19 = vector.load %arg4[%c0_16, %c0_17] : memref<128x128xbf16, #tpu.memory_space<vmem>>, vector<128x128xbf16>
    %cst_18 = arith.constant dense<0.000000e+00> : vector<8x128xf32>
    %20 = tpu.matmul %18, %19, %cst_18 {dimension_numbers = #tpu.dot_dimension_numbers<[1], [0], [0], [1], [0, 0, 1, 1], [], []>} : vector<8x128xbf16>, vector<128x128xbf16>, vector<8x128xf32> -> vector<8x128xf32>
    %21 = vector.broadcast %1 : vector<1x128xf32> to vector<8x128xf32>
    %22 = arith.addf %20, %21 : vector<8x128xf32>
    %cst_19 = arith.constant dense<0.000000e+00> : vector<8xf32>
    %23 = vector.multi_reduction <add>, %22, %cst_19 [1] : vector<8x128xf32> to vector<8xf32>
    %24 = vector.shape_cast %23 : vector<8xf32> to vector<8x1xf32>
    %cst_20 = arith.constant 1.280000e+02 : f32
    %25 = vector.broadcast %cst_20 : f32 to vector<8x1xf32>
    %26 = arith.divf %24, %25 : vector<8x1xf32>
    %27 = vector.broadcast %26 : vector<8x1xf32> to vector<8x128xf32>
    %28 = arith.subf %22, %27 : vector<8x128xf32>
    %29 = arith.mulf %28, %28 : vector<8x128xf32>
    %cst_21 = arith.constant dense<0.000000e+00> : vector<8xf32>
    %30 = vector.multi_reduction <add>, %29, %cst_21 [1] : vector<8x128xf32> to vector<8xf32>
    %31 = vector.shape_cast %30 : vector<8xf32> to vector<8x1xf32>
    %cst_22 = arith.constant 1.280000e+02 : f32
    %32 = vector.broadcast %cst_22 : f32 to vector<8x1xf32>
    %33 = arith.divf %31, %32 : vector<8x1xf32>
    %34 = vector.broadcast %26 : vector<8x1xf32> to vector<8x128xf32>
    %35 = arith.subf %22, %34 : vector<8x128xf32>
    %cst_23 = arith.constant 9.99999974E-6 : f32
    %36 = vector.broadcast %cst_23 : f32 to vector<8x1xf32>
    %37 = arith.addf %33, %36 : vector<8x1xf32>
    %38 = math.rsqrt %37 : vector<8x1xf32>
    %39 = vector.broadcast %38 : vector<8x1xf32> to vector<8x128xf32>
    %40 = arith.mulf %35, %39 : vector<8x128xf32>
    %41 = vector.broadcast %2 : vector<1x128xf32> to vector<8x128xf32>
    %42 = arith.mulf %40, %41 : vector<8x128xf32>
    %43 = vector.broadcast %3 : vector<1x128xf32> to vector<8x128xf32>
    %44 = arith.addf %42, %43 : vector<8x128xf32>
    %45 = arith.negf %44 : vector<8x128xf32>
    %46 = math.exp %45 : vector<8x128xf32>
    %cst_24 = arith.constant 1.000000e+00 : f32
    %47 = vector.broadcast %cst_24 : f32 to vector<8x128xf32>
    %48 = arith.addf %47, %46 : vector<8x128xf32>
    %49 = arith.divf %47, %48 : vector<8x128xf32>
    %50 = arith.mulf %44, %49 : vector<8x128xf32>
    %51 = vector.broadcast %4 : vector<1x128xf32> to vector<8x128xf32>
    %52 = arith.mulf %50, %51 : vector<8x128xf32>
    %cst_25 = arith.constant dense<0.000000e+00> : vector<8xf32>
    %53 = vector.multi_reduction <add>, %52, %cst_25 [1] : vector<8x128xf32> to vector<8xf32>
    %54 = vector.broadcast %5 : f32 to vector<8xf32>
    %55 = arith.addf %53, %54 : vector<8xf32>
    %56 = vector.shape_cast %55 : vector<8xf32> to vector<1x8xf32>
    %c0_26 = arith.constant 0 : index
    %c0_27 = arith.constant 0 : index
    %57 = vector.load %arg10[%c0_26, %c0_27] : memref<1x8xf32, #tpu.memory_space<vmem>>, vector<1x8xf32>
    tpu.vector_store %arg10[%c0_26, %c0_27], %56 {strides = array<i32>} : memref<1x8xf32, #tpu.memory_space<vmem>>, vector<1x8xf32>,
    return
  }
  func.func @transform_0(%arg0: i32) -> (i32, i32) {
    %c0_i32 = arith.constant 0 : i32
    %c0_i32_0 = arith.constant 0 : i32
    return %arg0, %c0_i32 : i32, i32
  }
  func.func @transform_1(%arg0: i32) -> (i32, i32) {
    %c0_i32 = arith.constant 0 : i32
    %c0_i32_0 = arith.constant 0 : i32
    %c0_i32_1 = arith.constant 0 : i32
    return %c0_i32, %c0_i32_0 : i32, i32
  }
  func.func @transform_2(%arg0: i32) -> (i32, i32) {
    %c0_i32 = arith.constant 0 : i32
    %c0_i32_0 = arith.constant 0 : i32
    %c0_i32_1 = arith.constant 0 : i32
    return %c0_i32, %c0_i32_0 : i32, i32
  }
  func.func @transform_3(%arg0: i32) -> (i32, i32) {
    %c0_i32 = arith.constant 0 : i32
    %c0_i32_0 = arith.constant 0 : i32
    %c0_i32_1 = arith.constant 0 : i32
    return %c0_i32, %c0_i32_0 : i32, i32
  }
  func.func @transform_4(%arg0: i32) -> (i32, i32) {
    %c0_i32 = arith.constant 0 : i32
    %c0_i32_0 = arith.constant 0 : i32
    %c0_i32_1 = arith.constant 0 : i32
    return %c0_i32, %c0_i32_0 : i32, i32
  }
  func.func @transform_5(%arg0: i32) -> (i32, i32) {
    %c0_i32 = arith.constant 0 : i32
    %c0_i32_0 = arith.constant 0 : i32
    %c0_i32_1 = arith.constant 0 : i32
    return %c0_i32, %c0_i32_0 : i32, i32
  }
  func.func @transform_6(%arg0: i32) -> (i32, i32) {
    %c0_i32 = arith.constant 0 : i32
    %c0_i32_0 = arith.constant 0 : i32
    %c0_i32_1 = arith.constant 0 : i32
    return %c0_i32, %c0_i32_0 : i32, i32
  }
  func.func @transform_7(%arg0: i32) -> (i32, i32) {
    %c0_i32 = arith.constant 0 : i32
    %c0_i32_0 = arith.constant 0 : i32
    %c0_i32_1 = arith.constant 0 : i32
    return %c0_i32, %c0_i32_0 : i32, i32
  }
  func.func @transform_8(%arg0: i32) -> (i32, i32) {
    %c0_i32 = arith.constant 0 : i32
    %c0_i32_0 = arith.constant 0 : i32
    %c0_i32_1 = arith.constant 0 : i32
    return %c0_i32, %c0_i32_0 : i32, i32
  }
  func.func @transform_9(%arg0: i32) -> (i32, i32) {
    %c0_i32 = arith.constant 0 : i32
    %c0_i32_0 = arith.constant 0 : i32
    return %c0_i32, %arg0 : i32, i32
  }
}

</mosaic_0001>

<llo_original>
// kernel: tpu_custom_call.1
$region0: #{tpu_custom_call.1}
  #allocation0 [shape = 'u32[]', space=smem, size = 0x4, offset = 0x4, fixed_abs, tag = 'smem constant byte address 0x4 - core index']
  #allocation1 [shape = 'u32[144,128]{1,0:T(1,128)}', space=vmem, size = 0x12000, scoped, tag = 'internal scratch']
  #allocation2 [shape = 'f32[1,1]{1,0:T(1,128)S(6)}', space=smem, size = 0x200, scoped, tag = 'scoped memory for tpu_custom_call.1']
  %s0 = inlined_call_operand.hbm [shape: f32[8,32], index: 0, kind: input, shape index: {}]
  %s1 = inlined_call_operand.hbm [shape: bf16[32,128], index: 1, kind: input, shape index: {}]
  %s2 = inlined_call_operand.vmem [shape: f32[1,128], index: 2, kind: input, shape index: {}]
  %s3 = inlined_call_operand.hbm [shape: bf16[128,128], index: 3, kind: input, shape index: {}]
  %s4 = inlined_call_operand.vmem [shape: f32[1,128], index: 4, kind: input, shape index: {}]
  %s5 = inlined_call_operand.vmem [shape: f32[1,128], index: 5, kind: input, shape index: {}]
  %s6 = inlined_call_operand.vmem [shape: f32[1,128], index: 6, kind: input, shape index: {}]
  %s7 = inlined_call_operand.vmem [shape: f32[1,128], index: 7, kind: input, shape index: {}]
  %s8 = inlined_call_operand.<no memory space> [shape: f32[1,1], index: 8, kind: input, shape index: {}]
  %s9 = inlined_call_operand.hbm [shape: f32[1,8], index: 9, kind: output, shape index: {}]
  %s10 = sld [smem:[#allocation0]]
  $region58: #{tpu_custom_call.1} parent=0
    _
  %s12 = ssub.s32 1, %s10
  %s13 = scalar_select 0, %s12, %s10
  %14 = sst [smem:[#allocation2]] %s8
  $region1: #{tpu_custom_call.1} parent=0
    #allocation3 [shape = 'u8[4096]{0}', space=vmem, size = 0x1000, scoped, tag = 'input window, operand 0, single buffered']
    #allocation4 [shape = 's32[1]{0}', space=sflag, size = 0x4, scoped, tag = 'scoped memory for tpu_custom_call.1']
    #allocation5 [shape = 's32[1]{0}', space=sflag, size = 0x4, scoped, tag = 'scoped memory for tpu_custom_call.1']
    #allocation6 [shape = 'u8[8192]{0}', space=vmem, size = 0x2000, scoped, tag = 'input window, operand 1, single buffered']
    #allocation7 [shape = 's32[1]{0}', space=sflag, size = 0x4, scoped, tag = 'scoped memory for tpu_custom_call.1']
    #allocation8 [shape = 'u8[32768]{0}', space=vmem, size = 0x8000, scoped, tag = 'input window, operand 3, single buffered']
    #allocation9 [shape = 'u8[512]{0}', space=vmem, size = 0x400, scoped, tag = 'output window, operand 0, single buffered']
    %15 = vsyncpa [#allocation4], 0
    %16 = vsyncpa [#allocation7], 0
    %17 = vsyncpa [#allocation5], 0
    // Predicated region
    $region2: #{tpu_custom_call.1} parent=1 // pred_check
      _
    $region3: #{tpu_custom_call.1} parent=1 // pred_check_branch
      %19 = sbr.rel (0) target = $region5
    $region4: #{tpu_custom_call.1} parent=1 // pred_region
      %s21 = ssub.s32 128, 128
      %22 = vsyncadd [#allocation4], %s21
      %s24 = sshll.u32 [#allocation3], 4
      %s25 = int_to_ptr.vmem [resolvable:$true] %s24
      %27 = dma.hbm_to_vmem [thread:$0]  %s0, 128, %s25, [#allocation4]
    $region5: #{tpu_custom_call.1} parent=1 // pred_fallthru
      _
    // Predicated region
    $region6: #{tpu_custom_call.1} parent=1 // pred_check
      _
    $region7: #{tpu_custom_call.1} parent=1 // pred_check_branch
      %29 = sbr.rel (0) target = $region9
    $region8: #{tpu_custom_call.1} parent=1 // pred_region
      %s31 = ssub.s32 256, 256
      %32 = vsyncadd [#allocation7], %s31
      %s33 = sshll.u32 [#allocation6], 4
      %s34 = int_to_ptr.vmem [resolvable:$true] %s33
      %39 = dma.hbm_to_vmem [thread:$0]  %s1, 256, %s34, [#allocation7], 64, 64, 4
    $region9: #{tpu_custom_call.1} parent=1 // pred_fallthru
      _
    // Predicated region
    $region10: #{tpu_custom_call.1} parent=1 // pred_check
      _
    $region11: #{tpu_custom_call.1} parent=1 // pred_check_branch
      %41 = sbr.rel (0) target = $region13
    $region12: #{tpu_custom_call.1} parent=1 // pred_region
      _
    $region13: #{tpu_custom_call.1} parent=1 // pred_fallthru
      _
    // Predicated region
    $region14: #{tpu_custom_call.1} parent=1 // pred_check
      _
    $region15: #{tpu_custom_call.1} parent=1 // pred_check_branch
      %43 = sbr.rel (0) target = $region17
    $region16: #{tpu_custom_call.1} parent=1 // pred_region
      %s45 = ssub.s32 1024, 1024
      %46 = vsyncadd [#allocation7], %s45
      %s47 = sshll.u32 [#allocation8], 4
      %s48 = int_to_ptr.vmem [resolvable:$true] %s47
      %53 = dma.hbm_to_vmem [thread:$0]  %s3, 1024, %s48, [#allocation7], 64, 64, 4
    $region17: #{tpu_custom_call.1} parent=1 // pred_fallthru
      _
    // Predicated region
    $region18: #{tpu_custom_call.1} parent=1 // pred_check
      _
    $region19: #{tpu_custom_call.1} parent=1 // pred_check_branch
      %55 = sbr.rel (0) target = $region21
    $region20: #{tpu_custom_call.1} parent=1 // pred_region
      _
    $region21: #{tpu_custom_call.1} parent=1 // pred_fallthru
      _
    // Predicated region
    $region22: #{tpu_custom_call.1} parent=1 // pred_check
      _
    $region23: #{tpu_custom_call.1} parent=1 // pred_check_branch
      %57 = sbr.rel (0) target = $region25
    $region24: #{tpu_custom_call.1} parent=1 // pred_region
      _
    $region25: #{tpu_custom_call.1} parent=1 // pred_fallthru
      _
    // Predicated region
    $region26: #{tpu_custom_call.1} parent=1 // pred_check
      _
    $region27: #{tpu_custom_call.1} parent=1 // pred_check_branch
      %59 = sbr.rel (0) target = $region29
    $region28: #{tpu_custom_call.1} parent=1 // pred_region
      _
    $region29: #{tpu_custom_call.1} parent=1 // pred_fallthru
      _
    // Predicated region
    $region30: #{tpu_custom_call.1} parent=1 // pred_check
      _
    $region31: #{tpu_custom_call.1} parent=1 // pred_check_branch
      %61 = sbr.rel (0) target = $region33
    $region32: #{tpu_custom_call.1} parent=1 // pred_region
      _
    $region33: #{tpu_custom_call.1} parent=1 // pred_fallthru
      _
    // Predicated region
    $region34: #{tpu_custom_call.1} parent=1 // pred_check
      _
    $region35: #{tpu_custom_call.1} parent=1 // pred_check_branch
      %63 = sbr.rel (0) target = $region37
    $region36: #{tpu_custom_call.1} parent=1 // pred_region
      _
    $region37: #{tpu_custom_call.1} parent=1 // pred_fallthru
      _
    // Predicated region
    $region38: #{tpu_custom_call.1} parent=1 // pred_check
      _
    $region39: #{tpu_custom_call.1} parent=1 // pred_check_branch
      %65 = sbr.rel (0) target = $region41
    $region40: #{tpu_custom_call.1} parent=1 // pred_region
      %66 = dma.done [#allocation4], 128
    $region41: #{tpu_custom_call.1} parent=1 // pred_fallthru
      _
    // Predicated region
    $region42: #{tpu_custom_call.1} parent=1 // pred_check
      _
    $region43: #{tpu_custom_call.1} parent=1 // pred_check_branch
      %68 = sbr.rel (0) target = $region45
    $region44: #{tpu_custom_call.1} parent=1 // pred_region
      %69 = dma.done [#allocation7], 256
    $region45: #{tpu_custom_call.1} parent=1 // pred_fallthru
      _
    // Predicated region
    $region46: #{tpu_custom_call.1} parent=1 // pred_check
      _
    $region47: #{tpu_custom_call.1} parent=1 // pred_check_branch
      %71 = sbr.rel (0) target = $region49
    $region48: #{tpu_custom_call.1} parent=1 // pred_region
      %72 = dma.done [#allocation7], 1024
    $region49: #{tpu_custom_call.1} parent=1 // pred_fallthru
      _
    %v74 = vld [vmem:[%s2] sm:$0x1]
    %v75 = vld [vmem:[%s4] sm:$0x1]
    %v76 = vld [vmem:[%s5] sm:$0x1]
    %v77 = vld [vmem:[%s6] sm:$0x1]
    %v78 = vld [vmem:[%s7] sm:$0x1]
    %s79 = sld [smem:[#allocation2]]
    %v80 = vld [vmem:[#allocation3] sm:$0xff]
    %v81 = vpack.c.bf16 %v80, %v80
    %v82 = vld [vmem:[#allocation6] sm:$0xf]
    %v83 = vld [vmem:[#allocation6 + $0x4] sm:$0xf]
    %v84 = vld [vmem:[#allocation6 + $0x8] sm:$0xf]
    %v85 = vld [vmem:[#allocation6 + $0xc] sm:$0xf]
    %v87 = vlaneseq
    %v88 = vshrl.u32 %v87, 7
    %v89 = vsub.s32 0, %v88
    %v90 = vrot.slane %v74, %v89
    %v96 = vunpack.c.l.b16 %v82
    %v97 = vunpack.c.l.b16 %v83
    %v98 = vunpack.c.l.b16 %v84
    %v99 = vunpack.c.l.b16 %v85
    %v100 = vpack.c.b16 %v97, %v96
    %v101 = vpack.c.b16 %v99, %v98
    %vm104 = vcmask 261120
    %v106 = vsel %vm104, %v81, 0
    %108 = vmatprep.subr.bf16.mxu0 0
    %109 = vmatpush1.bf16.msra.mxu0 0
    %110 = vmatprep.subr.bf16.mxu0 0
    %111 = vmatpush1.bf16.msra.mxu0 0
    %112 = vmatprep.subr.bf16.mxu0 0
    %113 = vmatpush1.bf16.msra.mxu0 0
    %114 = vmatprep.subr.bf16.mxu0 0
    %115 = vmatpush1.bf16.msra.mxu0 0
    %116 = vmatprep.subr.bf16.mxu0 0
    %117 = vmatpush1.bf16.msra.mxu0 0
    %118 = vmatprep.subr.bf16.mxu0 0
    %119 = vmatpush1.bf16.msra.mxu0 0
    %120 = vmatprep.subr.bf16.mxu0 0
    %121 = vmatpush1.bf16.msra.mxu0 %v101
    %122 = vmatprep.subr.bf16.mxu0 0
    %123 = vmatpush1.bf16.msra.mxu0 %v100
    %124 = vmatprep.subr.bf16.mxu0 0
    %125 = vmatpush2.bf16.msra.mxu0 0
    %126 = vmatprep.subr.bf16.mxu0 0
    %127 = vmatpush2.bf16.msra.mxu0 0
    %128 = vmatprep.subr.bf16.mxu0 0
    %129 = vmatpush2.bf16.msra.mxu0 0
    %130 = vmatprep.subr.bf16.mxu0 0
    %131 = vmatpush2.bf16.msra.mxu0 0
    %132 = vmatprep.subr.bf16.mxu0 0
    %133 = vmatpush2.bf16.msra.mxu0 0
    %134 = vmatprep.subr.bf16.mxu0 0
    %135 = vmatpush2.bf16.msra.mxu0 0
    %136 = vmatprep.subr.bf16.mxu0 0
    %137 = vmatpush2.bf16.msra.mxu0 0
    %138 = vmatprep.subr.bf16.mxu0 0
    %139 = vmatpush2.bf16.msra.mxu0 0
    %140 = vmatprep.mubr.bf16.mxu0 0
    %141 = vmatmul.mubr.bf16.gmra.mxu0 %v106
    %v142 = vpop.f32.mrf.mxu0
    %v143 = vadd.f32 %v90, %v142
    %v144 = vpop.f32.mrf.mxu0
    %v145 = vpop.f32.mrf.mxu0
    %v146 = vpop.f32.mrf.mxu0
    %147 = vdwg.mxu0
    %v148 = vxor.u32 %v143, 2147483648
    %v149 = vmul.f32 %v148, 1.442695
    %v150 = vpow.pop %v149
    %v151 = vadd.f32 %v150, 1.0
    %v152 = vrcp.pop %v151
    %v153 = vmul.f32 1.0, %v152
    %v154 = vmul.f32 %v143, %v153
    %v155 = vpack.c.bf16 %v154, %v154
    %v156 = vld [vmem:[#allocation8] sm:$0xf]
    %v157 = vld [vmem:[#allocation8 + $0x4] sm:$0xf]
    %v158 = vld [vmem:[#allocation8 + $0x8] sm:$0xf]
    %v159 = vld [vmem:[#allocation8 + $0xc] sm:$0xf]
    %v160 = vld [vmem:[#allocation8 + $0x10] sm:$0xf]
    %v161 = vld [vmem:[#allocation8 + $0x14] sm:$0xf]
    %v162 = vld [vmem:[#allocation8 + $0x18] sm:$0xf]
    %v163 = vld [vmem:[#allocation8 + $0x1c] sm:$0xf]
    %v164 = vld [vmem:[#allocation8 + $0x20] sm:$0xf]
    %v165 = vld [vmem:[#allocation8 + $0x24] sm:$0xf]
    %v166 = vld [vmem:[#allocation8 + $0x28] sm:$0xf]
    %v167 = vld [vmem:[#allocation8 + $0x2c] sm:$0xf]
    %v168 = vld [vmem:[#allocation8 + $0x30] sm:$0xf]
    %v169 = vld [vmem:[#allocation8 + $0x34] sm:$0xf]
    %v170 = vld [vmem:[#allocation8 + $0x38] sm:$0xf]
    %v171 = vld [vmem:[#allocation8 + $0x3c] sm:$0xf]
    %v173 = vlaneseq
    %v174 = vshrl.u32 %v173, 7
    %v175 = vsub.s32 0, %v174
    %v176 = vrot.slane %v75, %v175
    %v194 = vunpack.c.l.b16 %v156
    %v195 = vunpack.c.l.b16 %v157
    %v196 = vunpack.c.l.b16 %v158
    %v197 = vunpack.c.l.b16 %v159
    %v198 = vunpack.c.l.b16 %v160
    %v199 = vunpack.c.l.b16 %v161
    %v200 = vunpack.c.l.b16 %v162
    %v201 = vunpack.c.l.b16 %v163
    %v202 = vunpack.c.l.b16 %v164
    %v203 = vunpack.c.l.b16 %v165
    %v204 = vunpack.c.l.b16 %v166
    %v205 = vunpack.c.l.b16 %v167
    %v206 = vunpack.c.l.b16 %v168
    %v207 = vunpack.c.l.b16 %v169
    %v208 = vunpack.c.l.b16 %v170
    %v209 = vunpack.c.l.b16 %v171
    %v210 = vpack.c.b16 %v195, %v194
    %v211 = vpack.c.b16 %v197, %v196
    %v212 = vpack.c.b16 %v199, %v198
    %v213 = vpack.c.b16 %v201, %v200
    %v214 = vpack.c.b16 %v203, %v202
    %v215 = vpack.c.b16 %v205, %v204
    %v216 = vpack.c.b16 %v207, %v206
    %v217 = vpack.c.b16 %v209, %v208
    %226 = vmatprep.subr.bf16.mxu0 0
    %227 = vmatpush1.bf16.msra.mxu0 %v217
    %228 = vmatprep.subr.bf16.mxu0 0
    %229 = vmatpush1.bf16.msra.mxu0 %v216
    %230 = vmatprep.subr.bf16.mxu0 0
    %231 = vmatpush1.bf16.msra.mxu0 %v215
    %232 = vmatprep.subr.bf16.mxu0 0
    %233 = vmatpush1.bf16.msra.mxu0 %v214
    %234 = vmatprep.subr.bf16.mxu0 0
    %235 = vmatpush1.bf16.msra.mxu0 %v213
    %236 = vmatprep.subr.bf16.mxu0 0
    %237 = vmatpush1.bf16.msra.mxu0 %v212
    %238 = vmatprep.subr.bf16.mxu0 0
    %239 = vmatpush1.bf16.msra.mxu0 %v211
    %240 = vmatprep.subr.bf16.mxu0 0
    %241 = vmatpush1.bf16.msra.mxu0 %v210
    %242 = vmatprep.subr.bf16.mxu0 0
    %243 = vmatpush2.bf16.msra.mxu0 0
    %244 = vmatprep.subr.bf16.mxu0 0
    %245 = vmatpush2.bf16.msra.mxu0 0
    %246 = vmatprep.subr.bf16.mxu0 0
    %247 = vmatpush2.bf16.msra.mxu0 0
    %248 = vmatprep.subr.bf16.mxu0 0
    %249 = vmatpush2.bf16.msra.mxu0 0
    %250 = vmatprep.subr.bf16.mxu0 0
    %251 = vmatpush2.bf16.msra.mxu0 0
    %252 = vmatprep.subr.bf16.mxu0 0
    %253 = vmatpush2.bf16.msra.mxu0 0
    %254 = vmatprep.subr.bf16.mxu0 0
    %255 = vmatpush2.bf16.msra.mxu0 0
    %256 = vmatprep.subr.bf16.mxu0 0
    %257 = vmatpush2.bf16.msra.mxu0 0
    %258 = vmatprep.mubr.bf16.mxu0 0
    %259 = vmatmul.mubr.bf16.gmra.mxu0 %v155
    %v260 = vpop.f32.mrf.mxu0
    %v261 = vadd.f32 %v176, %v260
    %v262 = vpop.f32.mrf.mxu0
    %v263 = vpop.f32.mrf.mxu0
    %v264 = vpop.f32.mrf.mxu0
    %265 = vdwg.mxu0
    %266 = vadd.xlane.f32.xlu0 %v261
    %v267 = vpop.xlane.xlu0 %266
    %v268 = vrcp.pop 128.0
    %v269 = vmul.f32 %v267, %v268
    %v270 = vsub.f32 %v261, %v269
    %v271 = vmul.f32 %v270, %v270
    %272 = vadd.xlane.f32.xlu0 %v271
    %v273 = vpop.xlane.xlu0 %272
    %v274 = vmul.f32 %v273, %v268
    %v275 = vadd.f32 %v274, 1e-05
    %v276 = vrsqrt.pop %v275
    %v277 = vmul.f32 %v270, %v276
    %v279 = vlaneseq
    %v280 = vshrl.u32 %v279, 7
    %v281 = vsub.s32 0, %v280
    %v282 = vrot.slane %v76, %v281
    %v284 = vmul.f32 %v277, %v282
    %v286 = vlaneseq
    %v287 = vshrl.u32 %v286, 7
    %v288 = vsub.s32 0, %v287
    %v289 = vrot.slane %v77, %v288
    %v291 = vadd.f32 %v284, %v289
    %v292 = vxor.u32 %v291, 2147483648
    %v293 = vmul.f32 %v292, 1.442695
    %v294 = vpow.pop %v293
    %v295 = vadd.f32 %v294, 1.0
    %v296 = vrcp.pop %v295
    %v297 = vmul.f32 1.0, %v296
    %v298 = vmul.f32 %v291, %v297
    %v300 = vlaneseq
    %v301 = vshrl.u32 %v300, 7
    %v302 = vsub.s32 0, %v301
    %v303 = vrot.slane %v78, %v302
    %v305 = vmul.f32 %v298, %v303
    %306 = vadd.xlane.f32.xlu0 %v305
    %v307 = vpop.xlane.xlu0 %306
    %v308 = vstv %s79
    %v309 = vadd.f32 %v307, %v308
    %v311 = vlaneseq
    %v312 = vand.u32 %v311, 127
    %v313 = vlaneseq
    %v314 = vshrl.u32 %v313, 7
    %v315 = vsub.s32 %v312, %v314
    %v316 = vrot.slane %v309, %v315
    %vm318 = vcmask 57344
    %319 = vst.msk [vmem:[#allocation9] sm:$0x1] %vm318, %v316
    // Predicated region
    $region50: #{tpu_custom_call.1} parent=1 // pred_check
      _
    $region51: #{tpu_custom_call.1} parent=1 // pred_check_branch
      %321 = sbr.rel (0) target = $region53
    $region52: #{tpu_custom_call.1} parent=1 // pred_region
      %s323 = ssub.s32 16, 16
      %324 = vsyncadd [#allocation5], %s323
      %s326 = sshll.u32 [#allocation9], 4
      %s327 = int_to_ptr.vmem [resolvable:$true] %s326
      %329 = dma.vmem_to_hbm [thread:$0]  %s327, 16, %s9, [#allocation5]
    $region53: #{tpu_custom_call.1} parent=1 // pred_fallthru
      _
    // Predicated region
    $region54: #{tpu_custom_call.1} parent=1 // pred_check
      _
    $region55: #{tpu_custom_call.1} parent=1 // pred_check_branch
      %331 = sbr.rel (0) target = $region57
    $region56: #{tpu_custom_call.1} parent=1 // pred_region
      %332 = dma.done [#allocation5], 16
    $region57: #{tpu_custom_call.1} parent=1 // pred_fallthru
      _
    %333 = vsyncpa [#allocation4], 1
    %334 = vsyncpa [#allocation7], 1
    %335 = vsyncpa [#allocation5], 1

</llo_original>
